<compile_context>
chip_gen: v7x
topology: tpu7x:2x2x1
jax: 0.10.0
libtpu: 0.0.40
codegen_flags: <defaults>
</compile_context>

<pallas_src>
import functools

import jax
import jax.numpy as jnp
from jax.experimental import pallas as pl
from jax.experimental.pallas import tpu as pltpu


def _round_up(x, m):
    return (x + m - 1) // m * m


def _cdiv(a, b):
    return -(-a // b)


def generator_kernel(x_ref, w1_ref, b1_ref, w2_ref, b2_ref, w3_ref, b3_ref, o_ref):
    """One batch tile of the MLP.

    x_ref : [TB, Dp]  bf16
    w1_ref: [Dp, Hp]  bf16    b1_ref: [1, Hp] f32
    w2_ref: [Hp, Hp]  bf16    b2_ref: [1, Hp] f32
    w3_ref: [Hp, Op]  bf16    b3_ref: [1, Op] f32
    o_ref : [TB, Op]  bf16  (lane-dense: Op is a multiple of 128)
    """
    x = x_ref[...]

    # Linear 1 + ReLU  (bf16 operands, f32 accumulation on the MXU)
    h1 = jnp.dot(x, w1_ref[...], preferred_element_type=jnp.float32) + b1_ref[...]
    h1 = jnp.maximum(h1, 0.0)

    # Linear 2 + ReLU
    h2 = jnp.dot(h1.astype(jnp.bfloat16), w2_ref[...],
                 preferred_element_type=jnp.float32) + b2_ref[...]
    h2 = jnp.maximum(h2, 0.0)

    # Linear 3 (no activation in the Generator)
    h3 = jnp.dot(h2.astype(jnp.bfloat16), w3_ref[...],
                 preferred_element_type=jnp.float32) + b3_ref[...]
    o_ref[...] = h3.astype(o_ref.dtype)


def prepare_params(params):
    """Pad feature dims to lane multiples (128) and cast weights to bf16 ONCE.

    Returns (padded_param_tuple, (d_in, hidden, out_dim)). Call this once at
    init and pass the result to generator_forward on every call.
    """
    w1, b1, w2, b2, w3, b3 = params
    d_in, hidden = w1.shape
    out_dim = w3.shape[1]
    Dp = _round_up(d_in, 128)
    Hp = _round_up(hidden, 128)
    Op = _round_up(out_dim, 128)

    w1_p = jnp.zeros((Dp, Hp), jnp.bfloat16).at[:d_in, :hidden].set(
        w1.astype(jnp.bfloat16))
    b1_p = jnp.zeros((1, Hp), jnp.float32).at[:, :hidden].set(b1.reshape(1, -1))
    w2_p = jnp.zeros((Hp, Hp), jnp.bfloat16).at[:hidden, :hidden].set(
        w2.astype(jnp.bfloat16))
    b2_p = jnp.zeros((1, Hp), jnp.float32).at[:, :hidden].set(b2.reshape(1, -1))
    w3_p = jnp.zeros((Hp, Op), jnp.bfloat16).at[:hidden, :out_dim].set(
        w3.astype(jnp.bfloat16))
    b3_p = jnp.zeros((1, Op), jnp.float32).at[:, :out_dim].set(b3.reshape(1, -1))

    return (w1_p, b1_p, w2_p, b2_p, w3_p, b3_p), (d_in, hidden, out_dim)


@functools.partial(jax.jit, static_argnames=("d_in", "out_dim", "block_batch"))
def _forward_impl(x, expr, w1_p, b1_p, w2_p, b2_p, w3_p, b3_p, *,
                  d_in, out_dim, block_batch):
    B = x.shape[0]
    Dp, Hp = w1_p.shape
    Op = w3_p.shape[1]

    x_flat = x.reshape(B, -1)
    assert x_flat.shape[1] + expr.shape[1] == d_in, (x_flat.shape, expr.shape, d_in)

    # Batch tile: as large as requested, but with >= 2 grid steps when the
    # batch allows (so both v7x TensorCores get work); rows padded to /8.
    n_steps = max(1, _cdiv(B, block_batch))
    if B > 8:
        n_steps = max(n_steps, 2)
    TB = _round_up(_cdiv(B, n_steps), 8)
    Bp = _round_up(B, TB)
    grid = (Bp // TB,)

    # Single fused activation pass: concat -> bf16 -> pad (no f32 intermediate
    # and no per-call scatter into a zeros buffer).
    combined = jnp.concatenate([x_flat, expr], axis=1).astype(jnp.bfloat16)
    x_p = jnp.pad(combined, ((0, Bp - B), (0, Dp - d_in)))

    # Deeper pipelining on the streamed x operand only when tiles are small and
    # there are enough grid steps to fill the extra buffer.
    if TB <= 256 and grid[0] >= 3:
        x_spec = pl.BlockSpec((TB, Dp), lambda i: (i, 0),
                              pipeline_mode=pl.Buffered(3))
    else:
        x_spec = pl.BlockSpec((TB, Dp), lambda i: (i, 0))

    flops = 2 * Bp * (Dp * Hp + Hp * Hp + Hp * Op)
    bytes_accessed = (x_p.size * 2 + Bp * Op * 2
                      + (w1_p.size + w2_p.size + w3_p.size) * 2
                      + (b1_p.size + b2_p.size + b3_p.size) * 4)

    out = pl.pallas_call(
        generator_kernel,
        out_shape=jax.ShapeDtypeStruct((Bp, Op), jnp.bfloat16),
        grid=grid,
        in_specs=[
            x_spec,                                      # x tile follows the grid
            pl.BlockSpec((Dp, Hp), lambda i: (0, 0)),    # weights/biases resident
            pl.BlockSpec((1, Hp), lambda i: (0, 0)),
            pl.BlockSpec((Hp, Hp), lambda i: (0, 0)),
            pl.BlockSpec((1, Hp), lambda i: (0, 0)),
            pl.BlockSpec((Hp, Op), lambda i: (0, 0)),
            pl.BlockSpec((1, Op), lambda i: (0, 0)),
        ],
        out_specs=pl.BlockSpec((TB, Op), lambda i: (i, 0)),
        compiler_params=pltpu.CompilerParams(
            dimension_semantics=("parallel",),
        ),
        cost_estimate=pl.CostEstimate(
            flops=flops, transcendentals=0, bytes_accessed=bytes_accessed),
    )(x_p, w1_p, b1_p, w2_p, b2_p, w3_p, b3_p)

    # Drop batch/feature padding, upcast, and apply the module's .view(-1, 10, 4).
    return out[:B, :out_dim].astype(jnp.float32).reshape(B, 10, 4)


def generator_forward(x, expr, prepared_params, *, block_batch=512):
    """x: [B, seq, feat] (e.g. [B, 150, 4]); expr: [B, expr_dim]. Returns [B, 10, 4]."""
    padded, (d_in, hidden, out_dim) = prepared_params
    del hidden
    assert out_dim == 40, "Generator hard-codes .view(-1, 10, 4); out_dim must be 40."
    return _forward_impl(x, expr, *padded, d_in=d_in, out_dim=out_dim,
                         block_batch=block_batch)


def init_params(key, input_seq_dim, expr_dim, hidden_dim, output_dim):
    d_in = input_seq_dim + expr_dim
    ks = jax.random.split(key, 6)
    scale = 0.05
    w1 = scale * jax.random.normal(ks[0], (d_in, hidden_dim), jnp.float32)
    b1 = scale * jax.random.normal(ks[1], (1, hidden_dim), jnp.float32)
    w2 = scale * jax.random.normal(ks[2], (hidden_dim, hidden_dim), jnp.float32)
    b2 = scale * jax.random.normal(ks[3], (1, hidden_dim), jnp.float32)
    w3 = scale * jax.random.normal(ks[4], (hidden_dim, output_dim), jnp.float32)
    b3 = scale * jax.random.normal(ks[5], (1, output_dim), jnp.float32)
    return (w1, b1, w2, b2, w3, b3)


def reference_forward_bf16(x, expr, params):
    """Pure-JAX reference with the same bf16-operand / f32-accum / bf16-out math."""
    w1, b1, w2, b2, w3, b3 = params
    xf = jnp.concatenate([x.reshape(x.shape[0], -1), expr], axis=1).astype(jnp.float32)
    h = jnp.dot(xf.astype(jnp.bfloat16), w1.astype(jnp.bfloat16),
                preferred_element_type=jnp.float32) + b1
    h = jnp.maximum(h, 0.0)
    h = jnp.dot(h.astype(jnp.bfloat16), w2.astype(jnp.bfloat16),
                preferred_element_type=jnp.float32) + b2
    h = jnp.maximum(h, 0.0)
    h = jnp.dot(h.astype(jnp.bfloat16), w3.astype(jnp.bfloat16),
                preferred_element_type=jnp.float32) + b3
    h = h.astype(jnp.bfloat16).astype(jnp.float32)
    return h.reshape(-1, 10, 4)


def reference_forward_f32(x, expr, params):
    """Pure-f32 reference of the original PyTorch module's forward pass."""
    w1, b1, w2, b2, w3, b3 = params
    xf = jnp.concatenate([x.reshape(x.shape[0], -1), expr], axis=1)
    h = jnp.maximum(xf @ w1 + b1, 0.0)
    h = jnp.maximum(h @ w2 + b2, 0.0)
    h = h @ w3 + b3
    return h.reshape(-1, 10, 4)


if __name__ == "__main__":
    # Shapes consistent with the module: x is [B, 150, 4] -> 600 features,
    # expr is [B, 1]; hidden kept modest for a quick run; output is 10*4=40
    # (fixed by the final .view(-1, 10, 4)).
    seq_len, seq_feat = 150, 4          # input_seq_dim = 600
    expr_dim = 1
    hidden_dim = 128
    out_rows, out_cols = 10, 4          # output_dim = 40

    key = jax.random.PRNGKey(0)
    k_x, k_e, k_p = jax.random.split(key, 3)

    params = init_params(k_p, seq_len * seq_feat, expr_dim, hidden_dim,
                         out_rows * out_cols)
    prepared = prepare_params(params)   # padded + bf16 weights, built ONCE

    ok = True

    # Case 1: small batch, default tile -> 2 grid steps (v7x dual-TC path).
    x1 = jax.random.normal(k_x, (64, seq_len, seq_feat), jnp.float32)
    e1 = jax.random.normal(k_e, (64, expr_dim), jnp.float32)
    out1 = jax.block_until_ready(generator_forward(x1, e1, prepared))
    assert out1.shape == (64, out_rows, out_cols), out1.shape
    ok &= bool(jnp.allclose(out1, reference_forward_bf16(x1, e1, params),
                            atol=5e-3, rtol=5e-3))
    ok &= bool(jnp.allclose(out1, reference_forward_f32(x1, e1, params),
                            atol=5e-2, rtol=5e-2))

    # Case 2: larger batch with 256-row tiles and >=3 grid steps
    # (exercises the pl.Buffered(3) pipeline on the streamed x operand).
    x2 = jax.random.normal(jax.random.fold_in(k_x, 1),
                           (768, seq_len, seq_feat), jnp.float32)
    e2 = jax.random.normal(jax.random.fold_in(k_e, 1),
                           (768, expr_dim), jnp.float32)
    out2 = jax.block_until_ready(generator_forward(x2, e2, prepared,
                                                   block_batch=256))
    assert out2.shape == (768, out_rows, out_cols), out2.shape
    ok &= bool(jnp.allclose(out2, reference_forward_bf16(x2, e2, params),
                            atol=5e-3, rtol=5e-3))
    ok &= bool(jnp.allclose(out2, reference_forward_f32(x2, e2, params),
                            atol=5e-2, rtol=5e-2))

    assert ok, "kernel output mismatch vs references"
    print("KERNEL_OK")
</pallas_src>

<mosaic_0001>
module attributes {stable_mosaic.version = 11 : i64} {
  func.func @generator_kernel(%arg0: i32, %arg1: memref<32x640xbf16, #tpu.memory_space<vmem>>, %arg2: memref<640x128xbf16, #tpu.memory_space<vmem>>, %arg3: memref<1x128xf32, #tpu.memory_space<vmem>>, %arg4: memref<128x128xbf16, #tpu.memory_space<vmem>>, %arg5: memref<1x128xf32, #tpu.memory_space<vmem>>, %arg6: memref<128x128xbf16, #tpu.memory_space<vmem>>, %arg7: memref<1x128xf32, #tpu.memory_space<vmem>>, %arg8: memref<32x128xbf16, #tpu.memory_space<vmem>>) attributes {dimension_semantics = [#tpu.dimension_semantics<parallel>], iteration_bounds = array<i64: 2>, scalar_prefetch = 0 : i64, scratch_operands = 0 : i64, tpu.core_type = #tpu.core_type<tc>, window_params = [{transform_indices = @transform_0, window_bounds = array<i64: 32, 640>}, {pipeline_mode = #tpu.pipeline_mode<synchronous>, transform_indices = @transform_1, window_bounds = array<i64: 640, 128>}, {pipeline_mode = #tpu.pipeline_mode<synchronous>, transform_indices = @transform_2, window_bounds = array<i64: 1, 128>}, {pipeline_mode = #tpu.pipeline_mode<synchronous>, transform_indices = @transform_3, window_bounds = array<i64: 128, 128>}, {pipeline_mode = #tpu.pipeline_mode<synchronous>, transform_indices = @transform_4, window_bounds = array<i64: 1, 128>}, {pipeline_mode = #tpu.pipeline_mode<synchronous>, transform_indices = @transform_5, window_bounds = array<i64: 128, 128>}, {pipeline_mode = #tpu.pipeline_mode<synchronous>, transform_indices = @transform_6, window_bounds = array<i64: 1, 128>}, {transform_indices = @transform_7, window_bounds = array<i64: 32, 128>}]} {
    %c0 = arith.constant 0 : index
    %c0_0 = arith.constant 0 : index
    %0 = vector.load %arg1[%c0, %c0_0] : memref<32x640xbf16, #tpu.memory_space<vmem>>, vector<32x640xbf16>
    %c0_1 = arith.constant 0 : index
    %c0_2 = arith.constant 0 : index
    %1 = vector.load %arg2[%c0_1, %c0_2] : memref<640x128xbf16, #tpu.memory_space<vmem>>, vector<640x128xbf16>
    %cst = arith.constant dense<0.000000e+00> : vector<32x128xf32>
    %2 = tpu.matmul %0, %1, %cst {dimension_numbers = #tpu.dot_dimension_numbers<[1], [0], [0], [1], [0, 0, 1, 1], [], []>} : vector<32x640xbf16>, vector<640x128xbf16>, vector<32x128xf32> -> vector<32x128xf32>
    %c0_3 = arith.constant 0 : index
    %c0_4 = arith.constant 0 : index
    %3 = vector.load %arg3[%c0_3, %c0_4] : memref<1x128xf32, #tpu.memory_space<vmem>>, vector<1x128xf32>
    %4 = vector.broadcast %3 : vector<1x128xf32> to vector<32x128xf32>
    %5 = arith.addf %2, %4 : vector<32x128xf32>
    %cst_5 = arith.constant 0.000000e+00 : f32
    %6 = vector.broadcast %cst_5 : f32 to vector<32x128xf32>
    %7 = arith.maximumf %5, %6 : vector<32x128xf32>
    %8 = arith.truncf %7 : vector<32x128xf32> to vector<32x128xbf16>
    %c0_6 = arith.constant 0 : index
    %c0_7 = arith.constant 0 : index
    %9 = vector.load %arg4[%c0_6, %c0_7] : memref<128x128xbf16, #tpu.memory_space<vmem>>, vector<128x128xbf16>
    %cst_8 = arith.constant dense<0.000000e+00> : vector<32x128xf32>
    %10 = tpu.matmul %8, %9, %cst_8 {dimension_numbers = #tpu.dot_dimension_numbers<[1], [0], [0], [1], [0, 0, 1, 1], [], []>} : vector<32x128xbf16>, vector<128x128xbf16>, vector<32x128xf32> -> vector<32x128xf32>
    %c0_9 = arith.constant 0 : index
    %c0_10 = arith.constant 0 : index
    %11 = vector.load %arg5[%c0_9, %c0_10] : memref<1x128xf32, #tpu.memory_space<vmem>>, vector<1x128xf32>
    %12 = vector.broadcast %11 : vector<1x128xf32> to vector<32x128xf32>
    %13 = arith.addf %10, %12 : vector<32x128xf32>
    %cst_11 = arith.constant 0.000000e+00 : f32
    %14 = vector.broadcast %cst_11 : f32 to vector<32x128xf32>
    %15 = arith.maximumf %13, %14 : vector<32x128xf32>
    %16 = arith.truncf %15 : vector<32x128xf32> to vector<32x128xbf16>
    %c0_12 = arith.constant 0 : index
    %c0_13 = arith.constant 0 : index
    %17 = vector.load %arg6[%c0_12, %c0_13] : memref<128x128xbf16, #tpu.memory_space<vmem>>, vector<128x128xbf16>
    %cst_14 = arith.constant dense<0.000000e+00> : vector<32x128xf32>
    %18 = tpu.matmul %16, %17, %cst_14 {dimension_numbers = #tpu.dot_dimension_numbers<[1], [0], [0], [1], [0, 0, 1, 1], [], []>} : vector<32x128xbf16>, vector<128x128xbf16>, vector<32x128xf32> -> vector<32x128xf32>
    %c0_15 = arith.constant 0 : index
    %c0_16 = arith.constant 0 : index
    %19 = vector.load %arg7[%c0_15, %c0_16] : memref<1x128xf32, #tpu.memory_space<vmem>>, vector<1x128xf32>
    %20 = vector.broadcast %19 : vector<1x128xf32> to vector<32x128xf32>
    %21 = arith.addf %18, %20 : vector<32x128xf32>
    %22 = arith.truncf %21 : vector<32x128xf32> to vector<32x128xbf16>
    %c0_17 = arith.constant 0 : index
    %c0_18 = arith.constant 0 : index
    %23 = vector.load %arg8[%c0_17, %c0_18] : memref<32x128xbf16, #tpu.memory_space<vmem>>, vector<32x128xbf16>
    tpu.vector_store %arg8[%c0_17, %c0_18], %22 {strides = array<i32>} : memref<32x128xbf16, #tpu.memory_space<vmem>>, vector<32x128xbf16>,
    return
  }
  func.func @transform_0(%arg0: i32) -> (i32, i32) {
    %c0_i32 = arith.constant 0 : i32
    %c0_i32_0 = arith.constant 0 : i32
    return %arg0, %c0_i32 : i32, i32
  }
  func.func @transform_1(%arg0: i32) -> (i32, i32) {
    %c0_i32 = arith.constant 0 : i32
    %c0_i32_0 = arith.constant 0 : i32
    %c0_i32_1 = arith.constant 0 : i32
    return %c0_i32, %c0_i32_0 : i32, i32
  }
  func.func @transform_2(%arg0: i32) -> (i32, i32) {
    %c0_i32 = arith.constant 0 : i32
    %c0_i32_0 = arith.constant 0 : i32
    %c0_i32_1 = arith.constant 0 : i32
    return %c0_i32, %c0_i32_0 : i32, i32
  }
  func.func @transform_3(%arg0: i32) -> (i32, i32) {
    %c0_i32 = arith.constant 0 : i32
    %c0_i32_0 = arith.constant 0 : i32
    %c0_i32_1 = arith.constant 0 : i32
    return %c0_i32, %c0_i32_0 : i32, i32
  }
  func.func @transform_4(%arg0: i32) -> (i32, i32) {
    %c0_i32 = arith.constant 0 : i32
    %c0_i32_0 = arith.constant 0 : i32
    %c0_i32_1 = arith.constant 0 : i32
    return %c0_i32, %c0_i32_0 : i32, i32
  }
  func.func @transform_5(%arg0: i32) -> (i32, i32) {
    %c0_i32 = arith.constant 0 : i32
    %c0_i32_0 = arith.constant 0 : i32
    %c0_i32_1 = arith.constant 0 : i32
    return %c0_i32, %c0_i32_0 : i32, i32
  }
  func.func @transform_6(%arg0: i32) -> (i32, i32) {
    %c0_i32 = arith.constant 0 : i32
    %c0_i32_0 = arith.constant 0 : i32
    %c0_i32_1 = arith.constant 0 : i32
    return %c0_i32, %c0_i32_0 : i32, i32
  }
  func.func @transform_7(%arg0: i32) -> (i32, i32) {
    %c0_i32 = arith.constant 0 : i32
    %c0_i32_0 = arith.constant 0 : i32
    return %arg0, %c0_i32 : i32, i32
  }
}

</mosaic_0001>

<llo_original>
// kernel: _forward_impl.1
$region0: #{_forward_impl.1}
  #allocation0 [shape = 'u32[]', space=smem, size = 0x4, offset = 0x4, fixed_abs, tag = 'smem constant byte address 0x4 - core index']
  #allocation1 [shape = 'u32[144,128]{1,0:T(1,128)}', space=vmem, size = 0x12000, scoped, tag = 'internal scratch']
  %s0 = inlined_call_operand.vmem [shape: bf16[64,640], index: 0, kind: input, shape index: {}]
  %s1 = inlined_call_operand.vmem [shape: bf16[640,128], index: 1, kind: input, shape index: {}]
  %s2 = inlined_call_operand.vmem [shape: f32[1,128], index: 2, kind: input, shape index: {}]
  %s3 = inlined_call_operand.vmem [shape: bf16[128,128], index: 3, kind: input, shape index: {}]
  %s4 = inlined_call_operand.vmem [shape: f32[1,128], index: 4, kind: input, shape index: {}]
  %s5 = inlined_call_operand.vmem [shape: bf16[128,128], index: 5, kind: input, shape index: {}]
  %s6 = inlined_call_operand.vmem [shape: f32[1,128], index: 6, kind: input, shape index: {}]
  %s7 = inlined_call_operand.vmem [shape: bf16[64,128], index: 7, kind: output, shape index: {}]
  %s8 = sld [smem:[#allocation0]]
  $region61: #{_forward_impl.1} parent=0
    _
  %s10 = ssub.s32 1, %s8
  %s11 = scalar_select 0, %s10, %s8
  loop: start=0, step=1, limit=4
  $region2: #{_forward_impl.1} parent=0 // loop_pre_header
    _
  $region3: #{_forward_impl.1} parent=0 // loop_header
    %s13 = sphi 0, %s17
    %p14 = scmp.ge.s32.totalorder %s13, 4
    %s23 = sphi 0, %s25
    %s26 = sphi 0, %s23
    %s27 = sphi 0, %s26
    %s43 = sphi 0, %s27
    %s47 = sphi 0, %s47
    %s49 = sphi 0, %s47
    %s50 = sphi 0, %s49
    %s64 = sphi 0, %s50
    %s68 = sphi 0, %s68
    %s70 = sphi 0, %s68
    %s71 = sphi 0, %s70
    %s85 = sphi 0, %s71
    %s89 = sphi 0, %s89
    %s91 = sphi 0, %s89
    %s92 = sphi 0, %s91
    %s106 = sphi 0, %s92
    %s110 = sphi 0, %s110
    %s112 = sphi 0, %s110
    %s113 = sphi 0, %s112
    %s127 = sphi 0, %s113
    %s131 = sphi 0, %s131
    %s133 = sphi 0, %s131
    %s134 = sphi 0, %s133
    %s148 = sphi 0, %s134
    %s152 = sphi 0, %s152
    %s154 = sphi 0, %s152
    %s155 = sphi 0, %s154
    %s169 = sphi 0, %s155
    %s175 = sphi 0, %s177
    %s178 = sphi 0, %s175
    %s179 = sphi 0, %s178
    %s195 = sphi 0, %s179
  $region4: #{_forward_impl.1} parent=0 // loop_header_branch
    %16 = sbr.rel (%p14) target = $region8
  $region5: #{_forward_impl.1} parent=0 // loop_body
    %s18 = ssub.s32 %s13, 1
    %s19 = ssub.s32 %s13, 2
    %s20 = sadd.s32 %s13, 1
    %s21 = ssub.s32 %s13, %s20
    %p22 = scmp.eq.s32.totalorder %s21, 0
    %s24 = sadd.s32 %s23, 1
    %s25 = scalar_select %p22, %s23, %s24
    %p28 = pneg %p22
    %p29 = scmp.eq.s32.totalorder %s13, 1
    %p30 = por %p28, %p29
    %p31 = scmp.ne.s32.totalorder %s23, %s26
    %p32 = scmp.eq.s32.totalorder %s13, 0
    %p33 = por %p31, %p32
    %p34 = scmp.ne.s32.totalorder %s23, %s26
    %p35 = scmp.eq.s32.totalorder %s18, 1
    %p36 = por %p34, %p35
    %p37 = scmp.ne.s32.totalorder %s26, %s27
    %p38 = scmp.eq.s32.totalorder %s18, 0
    %p39 = por %p37, %p38
    %p40 = scmp.ne.s32.totalorder %s26, %s27
    %p41 = scmp.eq.s32.totalorder %s19, 1
    %p42 = por %p40, %p41
    %p44 = scmp.ne.s32.totalorder %s27, %s43
    %p45 = scmp.eq.s32.totalorder %s19, 0
    %p46 = por %p44, %p45
    %s48 = sadd.s32 %s47, 1
    %p51 = scmp.eq.s32.totalorder %s13, 1
    %p52 = scmp.ne.s32.totalorder %s47, %s49
    %p53 = scmp.eq.s32.totalorder %s13, 0
    %p54 = por %p52, %p53
    %p55 = scmp.ne.s32.totalorder %s47, %s49
    %p56 = scmp.eq.s32.totalorder %s18, 1
    %p57 = por %p55, %p56
    %p58 = scmp.ne.s32.totalorder %s49, %s50
    %p59 = scmp.eq.s32.totalorder %s18, 0
    %p60 = por %p58, %p59
    %p61 = scmp.ne.s32.totalorder %s49, %s50
    %p62 = scmp.eq.s32.totalorder %s19, 1
    %p63 = por %p61, %p62
    %p65 = scmp.ne.s32.totalorder %s50, %s64
    %p66 = scmp.eq.s32.totalorder %s19, 0
    %p67 = por %p65, %p66
    %s69 = sadd.s32 %s68, 1
    %p72 = scmp.eq.s32.totalorder %s13, 1
    %p73 = scmp.ne.s32.totalorder %s68, %s70
    %p74 = scmp.eq.s32.totalorder %s13, 0
    %p75 = por %p73, %p74
    %p76 = scmp.ne.s32.totalorder %s68, %s70
    %p77 = scmp.eq.s32.totalorder %s18, 1
    %p78 = por %p76, %p77
    %p79 = scmp.ne.s32.totalorder %s70, %s71
    %p80 = scmp.eq.s32.totalorder %s18, 0
    %p81 = por %p79, %p80
    %p82 = scmp.ne.s32.totalorder %s70, %s71
    %p83 = scmp.eq.s32.totalorder %s19, 1
    %p84 = por %p82, %p83
    %p86 = scmp.ne.s32.totalorder %s71, %s85
    %p87 = scmp.eq.s32.totalorder %s19, 0
    %p88 = por %p86, %p87
    %s90 = sadd.s32 %s89, 1
    %p93 = scmp.eq.s32.totalorder %s13, 1
    %p94 = scmp.ne.s32.totalorder %s89, %s91
    %p95 = scmp.eq.s32.totalorder %s13, 0
    %p96 = por %p94, %p95
    %p97 = scmp.ne.s32.totalorder %s89, %s91
    %p98 = scmp.eq.s32.totalorder %s18, 1
    %p99 = por %p97, %p98
    %p100 = scmp.ne.s32.totalorder %s91, %s92
    %p101 = scmp.eq.s32.totalorder %s18, 0
    %p102 = por %p100, %p101
    %p103 = scmp.ne.s32.totalorder %s91, %s92
    %p104 = scmp.eq.s32.totalorder %s19, 1
    %p105 = por %p103, %p104
    %p107 = scmp.ne.s32.totalorder %s92, %s106
    %p108 = scmp.eq.s32.totalorder %s19, 0
    %p109 = por %p107, %p108
    %s111 = sadd.s32 %s110, 1
    %p114 = scmp.eq.s32.totalorder %s13, 1
    %p115 = scmp.ne.s32.totalorder %s110, %s112
    %p116 = scmp.eq.s32.totalorder %s13, 0
    %p117 = por %p115, %p116
    %p118 = scmp.ne.s32.totalorder %s110, %s112
    %p119 = scmp.eq.s32.totalorder %s18, 1
    %p120 = por %p118, %p119
    %p121 = scmp.ne.s32.totalorder %s112, %s113
    %p122 = scmp.eq.s32.totalorder %s18, 0
    %p123 = por %p121, %p122
    %p124 = scmp.ne.s32.totalorder %s112, %s113
    %p125 = scmp.eq.s32.totalorder %s19, 1
    %p126 = por %p124, %p125
    %p128 = scmp.ne.s32.totalorder %s113, %s127
    %p129 = scmp.eq.s32.totalorder %s19, 0
    %p130 = por %p128, %p129
    %s132 = sadd.s32 %s131, 1
    %p135 = scmp.eq.s32.totalorder %s13, 1
    %p136 = scmp.ne.s32.totalorder %s131, %s133
    %p137 = scmp.eq.s32.totalorder %s13, 0
    %p138 = por %p136, %p137
    %p139 = scmp.ne.s32.totalorder %s131, %s133
    %p140 = scmp.eq.s32.totalorder %s18, 1
    %p141 = por %p139, %p140
    %p142 = scmp.ne.s32.totalorder %s133, %s134
    %p143 = scmp.eq.s32.totalorder %s18, 0
    %p144 = por %p142, %p143
    %p145 = scmp.ne.s32.totalorder %s133, %s134
    %p146 = scmp.eq.s32.totalorder %s19, 1
    %p147 = por %p145, %p146
    %p149 = scmp.ne.s32.totalorder %s134, %s148
    %p150 = scmp.eq.s32.totalorder %s19, 0
    %p151 = por %p149, %p150
    %s153 = sadd.s32 %s152, 1
    %p156 = scmp.eq.s32.totalorder %s13, 1
    %p157 = scmp.ne.s32.totalorder %s152, %s154
    %p158 = scmp.eq.s32.totalorder %s13, 0
    %p159 = por %p157, %p158
    %p160 = scmp.ne.s32.totalorder %s152, %s154
    %p161 = scmp.eq.s32.totalorder %s18, 1
    %p162 = por %p160, %p161
    %p163 = scmp.ne.s32.totalorder %s154, %s155
    %p164 = scmp.eq.s32.totalorder %s18, 0
    %p165 = por %p163, %p164
    %p166 = scmp.ne.s32.totalorder %s154, %s155
    %p167 = scmp.eq.s32.totalorder %s19, 1
    %p168 = por %p166, %p167
    %p170 = scmp.ne.s32.totalorder %s155, %s169
    %p171 = scmp.eq.s32.totalorder %s19, 0
    %p172 = por %p170, %p171
    %s173 = ssub.s32 %s13, %s20
    %p174 = scmp.eq.s32.totalorder %s173, 0
    %s176 = sadd.s32 %s175, 1
    %s177 = scalar_select %p174, %s175, %s176
    %p180 = pneg %p174
    %p181 = scmp.eq.s32.totalorder %s13, 1
    %p182 = por %p180, %p181
    %p183 = scmp.ne.s32.totalorder %s175, %s178
    %p184 = scmp.eq.s32.totalorder %s13, 0
    %p185 = por %p183, %p184
    %p186 = scmp.ne.s32.totalorder %s175, %s178
    %p187 = scmp.eq.s32.totalorder %s18, 1
    %p188 = por %p186, %p187
    %p189 = scmp.ne.s32.totalorder %s178, %s179
    %p190 = scmp.eq.s32.totalorder %s18, 0
    %p191 = por %p189, %p190
    %p192 = scmp.ne.s32.totalorder %s178, %s179
    %p193 = scmp.eq.s32.totalorder %s19, 1
    %p194 = por %p192, %p193
    %p196 = scmp.ne.s32.totalorder %s179, %s195
    %p197 = scmp.eq.s32.totalorder %s19, 0
    %p198 = por %p196, %p197
    %p199 = scmp.le.s32.totalorder 1, %s13
    %p200 = scmp.lt.s32.totalorder %s13, 3
    %p201 = pnand %p199, %p200
    %p202 = pneg %p201
    // Predicated region
    $region9: #{_forward_impl.1} parent=5 // pred_check
      _
    $region10: #{_forward_impl.1} parent=5 // pred_check_branch
      %204 = sbr.rel (%p201) target = $region12
    $region11: #{_forward_impl.1} parent=5 // pred_region
      %s205 = ssub.s32 %s13, 1
      // Predicated region
      $region13: #{_forward_impl.1} parent=11 // pred_check
        %p206 = pneg %p60
      $region14: #{_forward_impl.1} parent=11 // pred_check_branch
        %208 = sbr.rel (%p206) target = $region16
      $region15: #{_forward_impl.1} parent=11 // pred_region
        _
      $region16: #{_forward_impl.1} parent=11 // pred_fallthru
        _
      // Predicated region
      $region17: #{_forward_impl.1} parent=11 // pred_check
        %p209 = pneg %p81
      $region18: #{_forward_impl.1} parent=11 // pred_check_branch
        %211 = sbr.rel (%p209) target = $region20
      $region19: #{_forward_impl.1} parent=11 // pred_region
        _
      $region20: #{_forward_impl.1} parent=11 // pred_fallthru
        _
      // Predicated region
      $region21: #{_forward_impl.1} parent=11 // pred_check
        %p212 = pneg %p102
      $region22: #{_forward_impl.1} parent=11 // pred_check_branch
        %214 = sbr.rel (%p212) target = $region24
      $region23: #{_forward_impl.1} parent=11 // pred_region
        _
      $region24: #{_forward_impl.1} parent=11 // pred_fallthru
        _
      // Predicated region
      $region25: #{_forward_impl.1} parent=11 // pred_check
        %p215 = pneg %p123
      $region26: #{_forward_impl.1} parent=11 // pred_check_branch
        %217 = sbr.rel (%p215) target = $region28
      $region27: #{_forward_impl.1} parent=11 // pred_region
        _
      $region28: #{_forward_impl.1} parent=11 // pred_fallthru
        _
      // Predicated region
      $region29: #{_forward_impl.1} parent=11 // pred_check
        %p218 = pneg %p144
      $region30: #{_forward_impl.1} parent=11 // pred_check_branch
        %220 = sbr.rel (%p218) target = $region32
      $region31: #{_forward_impl.1} parent=11 // pred_region
        _
      $region32: #{_forward_impl.1} parent=11 // pred_fallthru
        _
      // Predicated region
      $region33: #{_forward_impl.1} parent=11 // pred_check
        %p221 = pneg %p165
      $region34: #{_forward_impl.1} parent=11 // pred_check_branch
        %223 = sbr.rel (%p221) target = $region36
      $region35: #{_forward_impl.1} parent=11 // pred_region
        _
      $region36: #{_forward_impl.1} parent=11 // pred_fallthru
        _
    $region12: #{_forward_impl.1} parent=5 // pred_fallthru
      _
    %p224 = scmp.lt.s32.totalorder %s13, 2
    // Predicated region
    $region37: #{_forward_impl.1} parent=5 // pred_check
      %p225 = pneg %p224
    $region38: #{_forward_impl.1} parent=5 // pred_check_branch
      %227 = sbr.rel (%p225) target = $region40
    $region39: #{_forward_impl.1} parent=5 // pred_region
      // Predicated region
      $region41: #{_forward_impl.1} parent=39 // pred_check
        %p228 = pneg %p33
      $region42: #{_forward_impl.1} parent=39 // pred_check_branch
        %230 = sbr.rel (%p228) target = $region44
      $region43: #{_forward_impl.1} parent=39 // pred_region
        %s231 = smul.u32 4, %s13
        %p232 = scmp.lt.s32.totalorder %s231, 7
        %s233 = scalar_select %p232, %s231, 7
        %s234 = smul.addr %s233, 5
        %s235 = smul.addr %s234, 4
        %s236 = scalar_lea.vmem %s0, %s235
        %s237 = smul.u32 4, %s13
      $region44: #{_forward_impl.1} parent=39 // pred_fallthru
        _
    $region40: #{_forward_impl.1} parent=5 // pred_fallthru
      _
    %p238 = scmp.le.s32.totalorder 1, %s13
    %p239 = scmp.lt.s32.totalorder %s13, 3
    %p240 = pnand %p238, %p239
    %p241 = pneg %p240
    // Predicated region
    $region45: #{_forward_impl.1} parent=5 // pred_check
      _
    $region46: #{_forward_impl.1} parent=5 // pred_check_branch
      %243 = sbr.rel (%p240) target = $region48
    $region47: #{_forward_impl.1} parent=5 // pred_region
      %s244 = ssub.s32 %s13, 1
      %s245 = smul.u32 4, %s18
      %p246 = scmp.lt.s32.totalorder %s245, 7
      %s247 = scalar_select %p246, %s245, 7
      %s248 = smul.addr %s247, 5
      %s249 = smul.addr %s248, 4
      %s250 = scalar_lea.vmem %s0, %s249
      %p251 = pneg %p39
      %p252 = pneg %p36
      %p253 = pneg %p60
      %p254 = pneg %p57
      %p255 = pneg %p81
      %p256 = pneg %p78
      %p257 = pneg %p102
      %p258 = pneg %p99
      %p259 = pneg %p123
      %p260 = pneg %p120
      %p261 = pneg %p144
      %p262 = pneg %p141
      %p263 = pneg %p165
      %p264 = pneg %p162
      %p265 = pneg %p191
      %p266 = pneg %p188
      %s267 = smul.u32 4, %s18
      %p268 = scmp.lt.s32.totalorder %s267, 7
      %s269 = scalar_select %p268, %s267, 7
      %s270 = smul.addr %s269, 4
      %s271 = scalar_lea.vmem %s7, %s270
      %s272 = smul.u32 4, %s18
      %p273 = scmp.lt.s32.totalorder %s272, 7
      %s274 = scalar_select %p273, %s272, 7
      %s275 = smul.addr %s274, 5
      %s276 = smul.addr %s275, 4
      %s277 = scalar_lea.vmem %s0, %s276
      %s278 = smul.u32 4, %s18
      %s279 = smul.u32 4, %s18
      %p280 = scmp.lt.s32.totalorder %s279, 7
      %s281 = scalar_select %p280, %s279, 7
      %s282 = smul.addr %s281, 4
      %s283 = scalar_lea.vmem %s7, %s282
      %s284 = smul.u32 4, %s18
      %v286 = vld [vmem:[%s277] sm:$0xff]
      %v287 = vld [vmem:[%s277 + $0x8] sm:$0xff]
      %v288 = vld [vmem:[%s277 + $0x10] sm:$0xf]
      %v289 = vld [vmem:[%s277 + $0x14] sm:$0xff]
      %v290 = vld [vmem:[%s277 + $0x1c] sm:$0xff]
      %v291 = vld [vmem:[%s277 + $0x24] sm:$0xf]
      %v292 = vld [vmem:[%s277 + $0x28] sm:$0xff]
      %v293 = vld [vmem:[%s277 + $0x30] sm:$0xff]
      %v294 = vld [vmem:[%s277 + $0x38] sm:$0xf]
      %v295 = vld [vmem:[%s277 + $0x3c] sm:$0xff]
      %v296 = vld [vmem:[%s277 + $0x44] sm:$0xff]
      %v297 = vld [vmem:[%s277 + $0x4c] sm:$0xf]
      %v298 = vld [vmem:[%s1] sm:$0xf]
      %v299 = vld [vmem:[%s1 + $0x4] sm:$0xf]
      %v300 = vld [vmem:[%s1 + $0x8] sm:$0xf]
      %v301 = vld [vmem:[%s1 + $0xc] sm:$0xf]
      %v302 = vld [vmem:[%s1 + $0x10] sm:$0xf]
      %v303 = vld [vmem:[%s1 + $0x14] sm:$0xf]
      %v304 = vld [vmem:[%s1 + $0x18] sm:$0xf]
      %v305 = vld [vmem:[%s1 + $0x1c] sm:$0xf]
      %v306 = vld [vmem:[%s1 + $0x20] sm:$0xf]
      %v307 = vld [vmem:[%s1 + $0x24] sm:$0xf]
      %v308 = vld [vmem:[%s1 + $0x28] sm:$0xf]
      %v309 = vld [vmem:[%s1 + $0x2c] sm:$0xf]
      %v310 = vld [vmem:[%s1 + $0x30] sm:$0xf]
      %v311 = vld [vmem:[%s1 + $0x34] sm:$0xf]
      %v312 = vld [vmem:[%s1 + $0x38] sm:$0xf]
      %v313 = vld [vmem:[%s1 + $0x3c] sm:$0xf]
      %v314 = vld [vmem:[%s1 + $0x40] sm:$0xf]
      %v315 = vld [vmem:[%s1 + $0x44] sm:$0xf]
      %v316 = vld [vmem:[%s1 + $0x48] sm:$0xf]
      %v317 = vld [vmem:[%s1 + $0x4c] sm:$0xf]
      %v318 = vld [vmem:[%s1 + $0x50] sm:$0xf]
      %v319 = vld [vmem:[%s1 + $0x54] sm:$0xf]
      %v320 = vld [vmem:[%s1 + $0x58] sm:$0xf]
      %v321 = vld [vmem:[%s1 + $0x5c] sm:$0xf]
      %v322 = vld [vmem:[%s1 + $0x60] sm:$0xf]
      %v323 = vld [vmem:[%s1 + $0x64] sm:$0xf]
      %v324 = vld [vmem:[%s1 + $0x68] sm:$0xf]
      %v325 = vld [vmem:[%s1 + $0x6c] sm:$0xf]
      %v326 = vld [vmem:[%s1 + $0x70] sm:$0xf]
      %v327 = vld [vmem:[%s1 + $0x74] sm:$0xf]
      %v328 = vld [vmem:[%s1 + $0x78] sm:$0xf]
      %v329 = vld [vmem:[%s1 + $0x7c] sm:$0xf]
      %v330 = vld [vmem:[%s1 + $0x80] sm:$0xf]
      %v331 = vld [vmem:[%s1 + $0x84] sm:$0xf]
      %v332 = vld [vmem:[%s1 + $0x88] sm:$0xf]
      %v333 = vld [vmem:[%s1 + $0x8c] sm:$0xf]
      %v334 = vld [vmem:[%s1 + $0x90] sm:$0xf]
      %v335 = vld [vmem:[%s1 + $0x94] sm:$0xf]
      %v336 = vld [vmem:[%s1 + $0x98] sm:$0xf]
      %v337 = vld [vmem:[%s1 + $0x9c] sm:$0xf]
      %v338 = vld [vmem:[%s1 + $0xa0] sm:$0xf]
      %v339 = vld [vmem:[%s1 + $0xa4] sm:$0xf]
      %v340 = vld [vmem:[%s1 + $0xa8] sm:$0xf]
      %v341 = vld [vmem:[%s1 + $0xac] sm:$0xf]
      %v342 = vld [vmem:[%s1 + $0xb0] sm:$0xf]
      %v343 = vld [vmem:[%s1 + $0xb4] sm:$0xf]
      %v344 = vld [vmem:[%s1 + $0xb8] sm:$0xf]
      %v345 = vld [vmem:[%s1 + $0xbc] sm:$0xf]
      %v346 = vld [vmem:[%s1 + $0xc0] sm:$0xf]
      %v347 = vld [vmem:[%s1 + $0xc4] sm:$0xf]
      %v348 = vld [vmem:[%s1 + $0xc8] sm:$0xf]
      %v349 = vld [vmem:[%s1 + $0xcc] sm:$0xf]
      %v350 = vld [vmem:[%s1 + $0xd0] sm:$0xf]
      %v351 = vld [vmem:[%s1 + $0xd4] sm:$0xf]
      %v352 = vld [vmem:[%s1 + $0xd8] sm:$0xf]
      %v353 = vld [vmem:[%s1 + $0xdc] sm:$0xf]
      %v354 = vld [vmem:[%s1 + $0xe0] sm:$0xf]
      %v355 = vld [vmem:[%s1 + $0xe4] sm:$0xf]
      %v356 = vld [vmem:[%s1 + $0xe8] sm:$0xf]
      %v357 = vld [vmem:[%s1 + $0xec] sm:$0xf]
      %v358 = vld [vmem:[%s1 + $0xf0] sm:$0xf]
      %v359 = vld [vmem:[%s1 + $0xf4] sm:$0xf]
      %v360 = vld [vmem:[%s1 + $0xf8] sm:$0xf]
      %v361 = vld [vmem:[%s1 + $0xfc] sm:$0xf]
      %v362 = vld [vmem:[%s1 + $0x100] sm:$0xf]
      %v363 = vld [vmem:[%s1 + $0x104] sm:$0xf]
      %v364 = vld [vmem:[%s1 + $0x108] sm:$0xf]
      %v365 = vld [vmem:[%s1 + $0x10c] sm:$0xf]
      %v366 = vld [vmem:[%s1 + $0x110] sm:$0xf]
      %v367 = vld [vmem:[%s1 + $0x114] sm:$0xf]
      %v368 = vld [vmem:[%s1 + $0x118] sm:$0xf]
      %v369 = vld [vmem:[%s1 + $0x11c] sm:$0xf]
      %v370 = vld [vmem:[%s1 + $0x120] sm:$0xf]
      %v371 = vld [vmem:[%s1 + $0x124] sm:$0xf]
      %v372 = vld [vmem:[%s1 + $0x128] sm:$0xf]
      %v373 = vld [vmem:[%s1 + $0x12c] sm:$0xf]
      %v374 = vld [vmem:[%s1 + $0x130] sm:$0xf]
      %v375 = vld [vmem:[%s1 + $0x134] sm:$0xf]
      %v376 = vld [vmem:[%s1 + $0x138] sm:$0xf]
      %v377 = vld [vmem:[%s1 + $0x13c] sm:$0xf]
      %v378 = vld [vmem:[%s2] sm:$0x1]
      %v380 = vlaneseq
      %v381 = vshrl.u32 %v380, 7
      %v382 = vsub.s32 0, %v381
      %v383 = vrot.slane %v378, %v382
      %v397 = vunpack.c.l.b16 %v286
      %v398 = vunpack.c.h.b16 %v286
      %v399 = vunpack.c.l.b16 %v287
      %v400 = vunpack.c.h.b16 %v287
      %v401 = vunpack.c.l.b16 %v288
      %v402 = vunpack.c.l.b16 %v289
      %v403 = vunpack.c.h.b16 %v289
      %v404 = vunpack.c.l.b16 %v290
      %v405 = vunpack.c.h.b16 %v290
      %v406 = vunpack.c.l.b16 %v291
      %v407 = vunpack.c.l.b16 %v292
      %v408 = vunpack.c.h.b16 %v292
      %v409 = vunpack.c.l.b16 %v293
      %v410 = vunpack.c.h.b16 %v293
      %v411 = vunpack.c.l.b16 %v294
      %v412 = vunpack.c.l.b16 %v295
      %v413 = vunpack.c.h.b16 %v295
      %v414 = vunpack.c.l.b16 %v296
      %v415 = vunpack.c.h.b16 %v296
      %v416 = vunpack.c.l.b16 %v297
      %v417 = vpack.c.b16 %v402, %v397
      %v418 = vpack.c.b16 %v403, %v398
      %v419 = vpack.c.b16 %v404, %v399
      %v420 = vpack.c.b16 %v405, %v400
      %v421 = vpack.c.b16 %v406, %v401
      %v422 = vpack.c.b16 %v412, %v407
      %v423 = vpack.c.b16 %v413, %v408
      %v424 = vpack.c.b16 %v414, %v409
      %v425 = vpack.c.b16 %v415, %v410
      %v426 = vpack.c.b16 %v416, %v411
      %v517 = vunpack.c.l.b16 %v298
      %v518 = vunpack.c.l.b16 %v299
      %v519 = vunpack.c.l.b16 %v300
      %v520 = vunpack.c.l.b16 %v301
      %v521 = vunpack.c.l.b16 %v302
      %v522 = vunpack.c.l.b16 %v303
      %v523 = vunpack.c.l.b16 %v304
      %v524 = vunpack.c.l.b16 %v305
      %v525 = vunpack.c.l.b16 %v306
      %v526 = vunpack.c.l.b16 %v307
      %v527 = vunpack.c.l.b16 %v308
      %v528 = vunpack.c.l.b16 %v309
      %v529 = vunpack.c.l.b16 %v310
      %v530 = vunpack.c.l.b16 %v311
      %v531 = vunpack.c.l.b16 %v312
      %v532 = vunpack.c.l.b16 %v313
      %v533 = vunpack.c.l.b16 %v314
      %v534 = vunpack.c.l.b16 %v315
      %v535 = vunpack.c.l.b16 %v316
      %v536 = vunpack.c.l.b16 %v317
      %v537 = vunpack.c.l.b16 %v318
      %v538 = vunpack.c.l.b16 %v319
      %v539 = vunpack.c.l.b16 %v320
      %v540 = vunpack.c.l.b16 %v321
      %v541 = vunpack.c.l.b16 %v322
      %v542 = vunpack.c.l.b16 %v323
      %v543 = vunpack.c.l.b16 %v324
      %v544 = vunpack.c.l.b16 %v325
      %v545 = vunpack.c.l.b16 %v326
      %v546 = vunpack.c.l.b16 %v327
      %v547 = vunpack.c.l.b16 %v328
      %v548 = vunpack.c.l.b16 %v329
      %v549 = vunpack.c.l.b16 %v330
      %v550 = vunpack.c.l.b16 %v331
      %v551 = vunpack.c.l.b16 %v332
      %v552 = vunpack.c.l.b16 %v333
      %v553 = vunpack.c.l.b16 %v334
      %v554 = vunpack.c.l.b16 %v335
      %v555 = vunpack.c.l.b16 %v336
      %v556 = vunpack.c.l.b16 %v337
      %v557 = vunpack.c.l.b16 %v338
      %v558 = vunpack.c.l.b16 %v339
      %v559 = vunpack.c.l.b16 %v340
      %v560 = vunpack.c.l.b16 %v341
      %v561 = vunpack.c.l.b16 %v342
      %v562 = vunpack.c.l.b16 %v343
      %v563 = vunpack.c.l.b16 %v344
      %v564 = vunpack.c.l.b16 %v345
      %v565 = vunpack.c.l.b16 %v346
      %v566 = vunpack.c.l.b16 %v347
      %v567 = vunpack.c.l.b16 %v348
      %v568 = vunpack.c.l.b16 %v349
      %v569 = vunpack.c.l.b16 %v350
      %v570 = vunpack.c.l.b16 %v351
      %v571 = vunpack.c.l.b16 %v352
      %v572 = vunpack.c.l.b16 %v353
      %v573 = vunpack.c.l.b16 %v354
      %v574 = vunpack.c.l.b16 %v355
      %v575 = vunpack.c.l.b16 %v356
      %v576 = vunpack.c.l.b16 %v357
      %v577 = vunpack.c.l.b16 %v358
      %v578 = vunpack.c.l.b16 %v359
      %v579 = vunpack.c.l.b16 %v360
      %v580 = vunpack.c.l.b16 %v361
      %v581 = vunpack.c.l.b16 %v362
      %v582 = vunpack.c.l.b16 %v363
      %v583 = vunpack.c.l.b16 %v364
      %v584 = vunpack.c.l.b16 %v365
      %v585 = vunpack.c.l.b16 %v366
      %v586 = vunpack.c.l.b16 %v367
      %v587 = vunpack.c.l.b16 %v368
      %v588 = vunpack.c.l.b16 %v369
      %v589 = vunpack.c.l.b16 %v370
      %v590 = vunpack.c.l.b16 %v371
      %v591 = vunpack.c.l.b16 %v372
      %v592 = vunpack.c.l.b16 %v373
      %v593 = vunpack.c.l.b16 %v374
      %v594 = vunpack.c.l.b16 %v375
      %v595 = vunpack.c.l.b16 %v376
      %v596 = vunpack.c.l.b16 %v377
      %v597 = vpack.c.b16 %v518, %v517
      %v598 = vpack.c.b16 %v520, %v519
      %v599 = vpack.c.b16 %v522, %v521
      %v600 = vpack.c.b16 %v524, %v523
      %v601 = vpack.c.b16 %v526, %v525
      %v602 = vpack.c.b16 %v528, %v527
      %v603 = vpack.c.b16 %v530, %v529
      %v604 = vpack.c.b16 %v532, %v531
      %v605 = vpack.c.b16 %v534, %v533
      %v606 = vpack.c.b16 %v536, %v535
      %v607 = vpack.c.b16 %v538, %v537
      %v608 = vpack.c.b16 %v540, %v539
      %v609 = vpack.c.b16 %v542, %v541
      %v610 = vpack.c.b16 %v544, %v543
      %v611 = vpack.c.b16 %v546, %v545
      %v612 = vpack.c.b16 %v548, %v547
      %v613 = vpack.c.b16 %v550, %v549
      %v614 = vpack.c.b16 %v552, %v551
      %v615 = vpack.c.b16 %v554, %v553
      %v616 = vpack.c.b16 %v556, %v555
      %v617 = vpack.c.b16 %v558, %v557
      %v618 = vpack.c.b16 %v560, %v559
      %v619 = vpack.c.b16 %v562, %v561
      %v620 = vpack.c.b16 %v564, %v563
      %v621 = vpack.c.b16 %v566, %v565
      %v622 = vpack.c.b16 %v568, %v567
      %v623 = vpack.c.b16 %v570, %v569
      %v624 = vpack.c.b16 %v572, %v571
      %v625 = vpack.c.b16 %v574, %v573
      %v626 = vpack.c.b16 %v576, %v575
      %v627 = vpack.c.b16 %v578, %v577
      %v628 = vpack.c.b16 %v580, %v579
      %v629 = vpack.c.b16 %v582, %v581
      %v630 = vpack.c.b16 %v584, %v583
      %v631 = vpack.c.b16 %v586, %v585
      %v632 = vpack.c.b16 %v588, %v587
      %v633 = vpack.c.b16 %v590, %v589
      %v634 = vpack.c.b16 %v592, %v591
      %v635 = vpack.c.b16 %v594, %v593
      %v636 = vpack.c.b16 %v596, %v595
      %677 = vmatprep.subr.bf16.mxu0 0
      %678 = vmatpush1.bf16.msra.mxu0 %v597
      %679 = vmatprep.subr.bf16.mxu0 0
      %680 = vmatpush1.bf16.msra.mxu0 %v598
      %681 = vmatprep.subr.bf16.mxu0 0
      %682 = vmatpush1.bf16.msra.mxu0 %v599
      %683 = vmatprep.subr.bf16.mxu0 0
      %684 = vmatpush1.bf16.msra.mxu0 %v600
      %685 = vmatprep.subr.bf16.mxu0 0
      %686 = vmatpush1.bf16.msra.mxu0 %v601
      %687 = vmatprep.subr.bf16.mxu0 0
      %688 = vmatpush1.bf16.msra.mxu0 %v602
      %689 = vmatprep.subr.bf16.mxu0 0
      %690 = vmatpush1.bf16.msra.mxu0 %v603
      %691 = vmatprep.subr.bf16.mxu0 0
      %692 = vmatpush1.bf16.msra.mxu0 %v604
      %693 = vmatprep.subr.bf16.mxu0 0
      %694 = vmatpush1.bf16.msra.mxu0 %v605
      %695 = vmatprep.subr.bf16.mxu0 0
      %696 = vmatpush1.bf16.msra.mxu0 %v606
      %697 = vmatprep.subr.bf16.mxu0 0
      %698 = vmatpush1.bf16.msra.mxu0 %v607
      %699 = vmatprep.subr.bf16.mxu0 0
      %700 = vmatpush1.bf16.msra.mxu0 %v608
      %701 = vmatprep.subr.bf16.mxu0 0
      %702 = vmatpush1.bf16.msra.mxu0 %v609
      %703 = vmatprep.subr.bf16.mxu0 0
      %704 = vmatpush1.bf16.msra.mxu0 %v610
      %705 = vmatprep.subr.bf16.mxu0 0
      %706 = vmatpush1.bf16.msra.mxu0 %v611
      %707 = vmatprep.subr.bf16.mxu0 0
      %708 = vmatpush1.bf16.msra.mxu0 %v612
      %709 = vmatprep.mubr.bf16.mxu0 %v418
      %710 = vmatmul.mubr.bf16.gmra.mrb[0].mxu0 %v417
      %v711 = vpop.f32.mrb[0].mxu0
      %v712 = vadd.f32 %v383, %v711
      %v713 = vpop.f32.mrb[0].mxu0
      %v714 = vpop.f32.mrb[0].mxu0
      %v715 = vadd.f32 %v383, %v714
      %v716 = vpop.f32.mrb[0].mxu0
      %717 = vmatprep.mubr.bf16.mxu0 %v423
      %718 = vmatmul.mubr.bf16.gmra.mrb[0].mxu0 %v422
      %v719 = vpop.f32.mrb[0].mxu0
      %v720 = vadd.f32 %v383, %v719
      %v721 = vpop.f32.mrb[0].mxu0
      %v722 = vpop.f32.mrb[0].mxu0
      %v723 = vadd.f32 %v383, %v722
      %v724 = vpop.f32.mrb[0].mxu0
      %725 = vdwg.mxu0
      %726 = vmatprep.subr.bf16.mxu0 0
      %727 = vmatpush1.bf16.msra.mxu0 %v613
      %728 = vmatprep.subr.bf16.mxu0 0
      %729 = vmatpush1.bf16.msra.mxu0 %v614
      %730 = vmatprep.subr.bf16.mxu0 0
      %731 = vmatpush1.bf16.msra.mxu0 %v615
      %732 = vmatprep.subr.bf16.mxu0 0
      %733 = vmatpush1.bf16.msra.mxu0 %v616
      %734 = vmatprep.subr.bf16.mxu0 0
      %735 = vmatpush1.bf16.msra.mxu0 %v617
      %736 = vmatprep.subr.bf16.mxu0 0
      %737 = vmatpush1.bf16.msra.mxu0 %v618
      %738 = vmatprep.subr.bf16.mxu0 0
      %739 = vmatpush1.bf16.msra.mxu0 %v619
      %740 = vmatprep.subr.bf16.mxu0 0
      %741 = vmatpush1.bf16.msra.mxu0 %v620
      %742 = vmatprep.subr.bf16.mxu0 0
      %743 = vmatpush1.bf16.msra.mxu0 %v621
      %744 = vmatprep.subr.bf16.mxu0 0
      %745 = vmatpush1.bf16.msra.mxu0 %v622
      %746 = vmatprep.subr.bf16.mxu0 0
      %747 = vmatpush1.bf16.msra.mxu0 %v623
      %748 = vmatprep.subr.bf16.mxu0 0
      %749 = vmatpush1.bf16.msra.mxu0 %v624
      %750 = vmatprep.subr.bf16.mxu0 0
      %751 = vmatpush1.bf16.msra.mxu0 %v625
      %752 = vmatprep.subr.bf16.mxu0 0
      %753 = vmatpush1.bf16.msra.mxu0 %v626
      %754 = vmatprep.subr.bf16.mxu0 0
      %755 = vmatpush1.bf16.msra.mxu0 %v627
      %756 = vmatprep.subr.bf16.mxu0 0
      %757 = vmatpush1.bf16.msra.mxu0 %v628
      %758 = vmatprep.mubr.bf16.mxu0 %v420
      %759 = vmatmul.mubr.bf16.gmra.mrb[0].mxu0 %v419
      %v760 = vpop.f32.mrb[0].mxu0
      %v761 = vadd.f32 %v712, %v760
      %v762 = vpop.f32.mrb[0].mxu0
      %v763 = vpop.f32.mrb[0].mxu0
      %v764 = vadd.f32 %v715, %v763
      %v765 = vpop.f32.mrb[0].mxu0
      %766 = vmatprep.mubr.bf16.mxu0 %v425
      %767 = vmatmul.mubr.bf16.gmra.mrb[0].mxu0 %v424
      %v768 = vpop.f32.mrb[0].mxu0
      %v769 = vadd.f32 %v720, %v768
      %v770 = vpop.f32.mrb[0].mxu0
      %v771 = vpop.f32.mrb[0].mxu0
      %v772 = vadd.f32 %v723, %v771
      %v773 = vpop.f32.mrb[0].mxu0
      %774 = vdwg.mxu0
      %775 = vmatprep.subr.bf16.mxu0 0
      %776 = vmatpush1.bf16.msra.mxu0 %v629
      %777 = vmatprep.subr.bf16.mxu0 0
      %778 = vmatpush1.bf16.msra.mxu0 %v630
      %779 = vmatprep.subr.bf16.mxu0 0
      %780 = vmatpush1.bf16.msra.mxu0 %v631
      %781 = vmatprep.subr.bf16.mxu0 0
      %782 = vmatpush1.bf16.msra.mxu0 %v632
      %783 = vmatprep.subr.bf16.mxu0 0
      %784 = vmatpush1.bf16.msra.mxu0 %v633
      %785 = vmatprep.subr.bf16.mxu0 0
      %786 = vmatpush1.bf16.msra.mxu0 %v634
      %787 = vmatprep.subr.bf16.mxu0 0
      %788 = vmatpush1.bf16.msra.mxu0 %v635
      %789 = vmatprep.subr.bf16.mxu0 0
      %790 = vmatpush1.bf16.msra.mxu0 %v636
      %791 = vmatprep.subr.bf16.mxu0 0
      %792 = vmatpush1.bf16.msra.mxu0 0
      %793 = vmatprep.subr.bf16.mxu0 0
      %794 = vmatpush1.bf16.msra.mxu0 0
      %795 = vmatprep.subr.bf16.mxu0 0
      %796 = vmatpush1.bf16.msra.mxu0 0
      %797 = vmatprep.subr.bf16.mxu0 0
      %798 = vmatpush1.bf16.msra.mxu0 0
      %799 = vmatprep.subr.bf16.mxu0 0
      %800 = vmatpush1.bf16.msra.mxu0 0
      %801 = vmatprep.subr.bf16.mxu0 0
      %802 = vmatpush1.bf16.msra.mxu0 0
      %803 = vmatprep.subr.bf16.mxu0 0
      %804 = vmatpush1.bf16.msra.mxu0 0
      %805 = vmatprep.subr.bf16.mxu0 0
      %806 = vmatpush1.bf16.msra.mxu0 0
      %807 = vmatprep.mubr.bf16.mxu0 0
      %808 = vmatmul.mubr.bf16.gmra.mrb[0].mxu0 %v421
      %v809 = vpop.f32.mrb[0].mxu0
      %v810 = vadd.f32 %v761, %v809
      %v811 = vpop.f32.mrb[0].mxu0
      %v812 = vpop.f32.mrb[0].mxu0
      %v813 = vadd.f32 %v764, %v812
      %v814 = vpop.f32.mrb[0].mxu0
      %815 = vmatprep.mubr.bf16.mxu0 0
      %816 = vmatmul.mubr.bf16.gmra.mrb[0].mxu0 %v426
      %v817 = vpop.f32.mrb[0].mxu0
      %v818 = vadd.f32 %v769, %v817
      %v819 = vpop.f32.mrb[0].mxu0
      %v820 = vpop.f32.mrb[0].mxu0
      %v821 = vadd.f32 %v772, %v820
      %v822 = vpop.f32.mrb[0].mxu0
      %823 = vdwg.mxu0
      %v824 = vmax.f32 %v810, 0.0
      %v825 = vmax.f32 %v813, 0.0
      %v826 = vmax.f32 %v818, 0.0
      %v827 = vmax.f32 %v821, 0.0
      %v828 = vpack.c.bf16 %v825, %v824
      %v829 = vpack.c.bf16 %v827, %v826
      %v830 = vld [vmem:[%s3] sm:$0xf]
      %v831 = vld [vmem:[%s3 + $0x4] sm:$0xf]
      %v832 = vld [vmem:[%s3 + $0x8] sm:$0xf]
      %v833 = vld [vmem:[%s3 + $0xc] sm:$0xf]
      %v834 = vld [vmem:[%s3 + $0x10] sm:$0xf]
      %v835 = vld [vmem:[%s3 + $0x14] sm:$0xf]
      %v836 = vld [vmem:[%s3 + $0x18] sm:$0xf]
      %v837 = vld [vmem:[%s3 + $0x1c] sm:$0xf]
      %v838 = vld [vmem:[%s3 + $0x20] sm:$0xf]
      %v839 = vld [vmem:[%s3 + $0x24] sm:$0xf]
      %v840 = vld [vmem:[%s3 + $0x28] sm:$0xf]
      %v841 = vld [vmem:[%s3 + $0x2c] sm:$0xf]
      %v842 = vld [vmem:[%s3 + $0x30] sm:$0xf]
      %v843 = vld [vmem:[%s3 + $0x34] sm:$0xf]
      %v844 = vld [vmem:[%s3 + $0x38] sm:$0xf]
      %v845 = vld [vmem:[%s3 + $0x3c] sm:$0xf]
      %v846 = vld [vmem:[%s4] sm:$0x1]
      %v848 = vlaneseq
      %v849 = vshrl.u32 %v848, 7
      %v850 = vsub.s32 0, %v849
      %v851 = vrot.slane %v846, %v850
      %v869 = vunpack.c.l.b16 %v830
      %v870 = vunpack.c.l.b16 %v831
      %v871 = vunpack.c.l.b16 %v832
      %v872 = vunpack.c.l.b16 %v833
      %v873 = vunpack.c.l.b16 %v834
      %v874 = vunpack.c.l.b16 %v835
      %v875 = vunpack.c.l.b16 %v836
      %v876 = vunpack.c.l.b16 %v837
      %v877 = vunpack.c.l.b16 %v838
      %v878 = vunpack.c.l.b16 %v839
      %v879 = vunpack.c.l.b16 %v840
      %v880 = vunpack.c.l.b16 %v841
      %v881 = vunpack.c.l.b16 %v842
      %v882 = vunpack.c.l.b16 %v843
      %v883 = vunpack.c.l.b16 %v844
      %v884 = vunpack.c.l.b16 %v845
      %v885 = vpack.c.b16 %v870, %v869
      %v886 = vpack.c.b16 %v872, %v871
      %v887 = vpack.c.b16 %v874, %v873
      %v888 = vpack.c.b16 %v876, %v875
      %v889 = vpack.c.b16 %v878, %v877
      %v890 = vpack.c.b16 %v880, %v879
      %v891 = vpack.c.b16 %v882, %v881
      %v892 = vpack.c.b16 %v884, %v883
      %901 = vmatprep.subr.bf16.mxu0 0
      %902 = vmatpush1.bf16.msra.mxu0 %v885
      %903 = vmatprep.subr.bf16.mxu0 0
      %904 = vmatpush1.bf16.msra.mxu0 %v886
      %905 = vmatprep.subr.bf16.mxu0 0
      %906 = vmatpush1.bf16.msra.mxu0 %v887
      %907 = vmatprep.subr.bf16.mxu0 0
      %908 = vmatpush1.bf16.msra.mxu0 %v888
      %909 = vmatprep.subr.bf16.mxu0 0
      %910 = vmatpush1.bf16.msra.mxu0 %v889
      %911 = vmatprep.subr.bf16.mxu0 0
      %912 = vmatpush1.bf16.msra.mxu0 %v890
      %913 = vmatprep.subr.bf16.mxu0 0
      %914 = vmatpush1.bf16.msra.mxu0 %v891
      %915 = vmatprep.subr.bf16.mxu0 0
      %916 = vmatpush1.bf16.msra.mxu0 %v892
      %917 = vmatprep.subr.bf16.mxu0 0
      %918 = vmatpush1.bf16.msra.mxu0 0
      %919 = vmatprep.subr.bf16.mxu0 0
      %920 = vmatpush1.bf16.msra.mxu0 0
      %921 = vmatprep.subr.bf16.mxu0 0
      %922 = vmatpush1.bf16.msra.mxu0 0
      %923 = vmatprep.subr.bf16.mxu0 0
      %924 = vmatpush1.bf16.msra.mxu0 0
      %925 = vmatprep.subr.bf16.mxu0 0
      %926 = vmatpush1.bf16.msra.mxu0 0
      %927 = vmatprep.subr.bf16.mxu0 0
      %928 = vmatpush1.bf16.msra.mxu0 0
      %929 = vmatprep.subr.bf16.mxu0 0
      %930 = vmatpush1.bf16.msra.mxu0 0
      %931 = vmatprep.subr.bf16.mxu0 0
      %932 = vmatpush1.bf16.msra.mxu0 0
      %933 = vmatprep.mubr.bf16.mxu0 0
      %934 = vmatmul.mubr.bf16.gmra.mrb[0].mxu0 %v828
      %v935 = vpop.f32.mrb[0].mxu0
      %v936 = vadd.f32 %v851, %v935
      %v937 = vpop.f32.mrb[0].mxu0
      %v938 = vpop.f32.mrb[0].mxu0
      %v939 = vadd.f32 %v851, %v938
      %v940 = vpop.f32.mrb[0].mxu0
      %941 = vmatprep.mubr.bf16.mxu0 0
      %942 = vmatmul.mubr.bf16.gmra.mrb[0].mxu0 %v829
      %v943 = vpop.f32.mrb[0].mxu0
      %v944 = vadd.f32 %v851, %v943
      %v945 = vpop.f32.mrb[0].mxu0
      %v946 = vpop.f32.mrb[0].mxu0
      %v947 = vadd.f32 %v851, %v946
      %v948 = vpop.f32.mrb[0].mxu0
      %949 = vdwg.mxu0
      %v950 = vmax.f32 %v936, 0.0
      %v951 = vmax.f32 %v939, 0.0
      %v952 = vmax.f32 %v944, 0.0
      %v953 = vmax.f32 %v947, 0.0
      %v954 = vpack.c.bf16 %v951, %v950
      %v955 = vpack.c.bf16 %v953, %v952
      %v956 = vld [vmem:[%s5] sm:$0xf]
      %v957 = vld [vmem:[%s5 + $0x4] sm:$0xf]
      %v958 = vld [vmem:[%s5 + $0x8] sm:$0xf]
      %v959 = vld [vmem:[%s5 + $0xc] sm:$0xf]
      %v960 = vld [vmem:[%s5 + $0x10] sm:$0xf]
      %v961 = vld [vmem:[%s5 + $0x14] sm:$0xf]
      %v962 = vld [vmem:[%s5 + $0x18] sm:$0xf]
      %v963 = vld [vmem:[%s5 + $0x1c] sm:$0xf]
      %v964 = vld [vmem:[%s5 + $0x20] sm:$0xf]
      %v965 = vld [vmem:[%s5 + $0x24] sm:$0xf]
      %v966 = vld [vmem:[%s5 + $0x28] sm:$0xf]
      %v967 = vld [vmem:[%s5 + $0x2c] sm:$0xf]
      %v968 = vld [vmem:[%s5 + $0x30] sm:$0xf]
      %v969 = vld [vmem:[%s5 + $0x34] sm:$0xf]
      %v970 = vld [vmem:[%s5 + $0x38] sm:$0xf]
      %v971 = vld [vmem:[%s5 + $0x3c] sm:$0xf]
      %v972 = vld [vmem:[%s6] sm:$0x1]
      %v974 = vlaneseq
      %v975 = vshrl.u32 %v974, 7
      %v976 = vsub.s32 0, %v975
      %v977 = vrot.slane %v972, %v976
      %v995 = vunpack.c.l.b16 %v956
      %v996 = vunpack.c.l.b16 %v957
      %v997 = vunpack.c.l.b16 %v958
      %v998 = vunpack.c.l.b16 %v959
      %v999 = vunpack.c.l.b16 %v960
      %v1000 = vunpack.c.l.b16 %v961
      %v1001 = vunpack.c.l.b16 %v962
      %v1002 = vunpack.c.l.b16 %v963
      %v1003 = vunpack.c.l.b16 %v964
      %v1004 = vunpack.c.l.b16 %v965
      %v1005 = vunpack.c.l.b16 %v966
      %v1006 = vunpack.c.l.b16 %v967
      %v1007 = vunpack.c.l.b16 %v968
      %v1008 = vunpack.c.l.b16 %v969
      %v1009 = vunpack.c.l.b16 %v970
      %v1010 = vunpack.c.l.b16 %v971
      %v1011 = vpack.c.b16 %v996, %v995
      %v1012 = vpack.c.b16 %v998, %v997
      %v1013 = vpack.c.b16 %v1000, %v999
      %v1014 = vpack.c.b16 %v1002, %v1001
      %v1015 = vpack.c.b16 %v1004, %v1003
      %v1016 = vpack.c.b16 %v1006, %v1005
      %v1017 = vpack.c.b16 %v1008, %v1007
      %v1018 = vpack.c.b16 %v1010, %v1009
      %1027 = vmatprep.subr.bf16.mxu0 0
      %1028 = vmatpush1.bf16.msra.mxu0 %v1011
      %1029 = vmatprep.subr.bf16.mxu0 0
      %1030 = vmatpush1.bf16.msra.mxu0 %v1012
      %1031 = vmatprep.subr.bf16.mxu0 0
      %1032 = vmatpush1.bf16.msra.mxu0 %v1013
      %1033 = vmatprep.subr.bf16.mxu0 0
      %1034 = vmatpush1.bf16.msra.mxu0 %v1014
      %1035 = vmatprep.subr.bf16.mxu0 0
      %1036 = vmatpush1.bf16.msra.mxu0 %v1015
      %1037 = vmatprep.subr.bf16.mxu0 0
      %1038 = vmatpush1.bf16.msra.mxu0 %v1016
      %1039 = vmatprep.subr.bf16.mxu0 0
      %1040 = vmatpush1.bf16.msra.mxu0 %v1017
      %1041 = vmatprep.subr.bf16.mxu0 0
      %1042 = vmatpush1.bf16.msra.mxu0 %v1018
      %1043 = vmatprep.subr.bf16.mxu0 0
      %1044 = vmatpush1.bf16.msra.mxu0 0
      %1045 = vmatprep.subr.bf16.mxu0 0
      %1046 = vmatpush1.bf16.msra.mxu0 0
      %1047 = vmatprep.subr.bf16.mxu0 0
      %1048 = vmatpush1.bf16.msra.mxu0 0
      %1049 = vmatprep.subr.bf16.mxu0 0
      %1050 = vmatpush1.bf16.msra.mxu0 0
      %1051 = vmatprep.subr.bf16.mxu0 0
      %1052 = vmatpush1.bf16.msra.mxu0 0
      %1053 = vmatprep.subr.bf16.mxu0 0
      %1054 = vmatpush1.bf16.msra.mxu0 0
      %1055 = vmatprep.subr.bf16.mxu0 0
      %1056 = vmatpush1.bf16.msra.mxu0 0
      %1057 = vmatprep.subr.bf16.mxu0 0
      %1058 = vmatpush1.bf16.msra.mxu0 0
      %1059 = vmatprep.mubr.bf16.mxu0 0
      %1060 = vmatmul.mubr.bf16.gmra.mrb[0].mxu0 %v954
      %v1061 = vpop.f32.mrb[0].mxu0
      %v1062 = vadd.f32 %v977, %v1061
      %v1063 = vpop.f32.mrb[0].mxu0
      %v1064 = vpop.f32.mrb[0].mxu0
      %v1065 = vadd.f32 %v977, %v1064
      %v1066 = vpop.f32.mrb[0].mxu0
      %1067 = vmatprep.mubr.bf16.mxu0 0
      %1068 = vmatmul.mubr.bf16.gmra.mrb[0].mxu0 %v955
      %v1069 = vpop.f32.mrb[0].mxu0
      %v1070 = vadd.f32 %v977, %v1069
      %v1071 = vpop.f32.mrb[0].mxu0
      %v1072 = vpop.f32.mrb[0].mxu0
      %v1073 = vadd.f32 %v977, %v1072
      %v1074 = vpop.f32.mrb[0].mxu0
      %1075 = vdwg.mxu0
      %v1076 = vpack.c.bf16 %v1065, %v1062
      %v1077 = vpack.c.bf16 %v1073, %v1070
      %v1080 = vunpack.c.l.b16 %v1076
      %v1081 = vunpack.c.h.b16 %v1076
      %v1082 = vunpack.c.l.b16 %v1077
      %v1083 = vunpack.c.h.b16 %v1077
      %v1084 = vpack.c.b16 %v1080, %v1080
      %v1085 = vpack.c.b16 %v1081, %v1081
      %v1086 = vpack.c.b16 %v1082, %v1082
      %v1087 = vpack.c.b16 %v1083, %v1083
      %1092 = vst [vmem:[%s283] sm:$0xf] %v1084
      %1093 = vst [vmem:[%s283 + $0x4] sm:$0xf] %v1085
      %1094 = vst [vmem:[%s283 + $0x8] sm:$0xf] %v1086
      %1095 = vst [vmem:[%s283 + $0xc] sm:$0xf] %v1087
      %s1096 = smul.u32 4, %s18
      %p1097 = scmp.lt.s32.totalorder %s1096, 7
      %s1098 = scalar_select %p1097, %s1096, 7
      %s1099 = smul.addr %s1098, 4
      %s1100 = scalar_lea.vmem %s7, %s1099
      // Predicated region
      $region49: #{_forward_impl.1} parent=47 // pred_check
        %p1101 = pneg %p188
      $region50: #{_forward_impl.1} parent=47 // pred_check_branch
        %1103 = sbr.rel (%p1101) target = $region52
      $region51: #{_forward_impl.1} parent=47 // pred_region
        %s1104 = smul.u32 4, %s18
      $region52: #{_forward_impl.1} parent=47 // pred_fallthru
        _
    $region48: #{_forward_impl.1} parent=5 // pred_fallthru
      _
    %p1105 = scmp.le.s32.totalorder 2, %s13
    // Predicated region
    $region53: #{_forward_impl.1} parent=5 // pred_check
      %p1106 = pneg %p1105
    $region54: #{_forward_impl.1} parent=5 // pred_check_branch
      %1108 = sbr.rel (%p1106) target = $region56
    $region55: #{_forward_impl.1} parent=5 // pred_region
      %s1109 = ssub.s32 %s13, 2
      // Predicated region
      $region57: #{_forward_impl.1} parent=55 // pred_check
        %p1110 = pneg %p194
      $region58: #{_forward_impl.1} parent=55 // pred_check_branch
        %1112 = sbr.rel (%p1110) target = $region60
      $region59: #{_forward_impl.1} parent=55 // pred_region
        %s1113 = smul.u32 4, %s19
        %p1114 = scmp.lt.s32.totalorder %s1113, 7
        %s1115 = scalar_select %p1114, %s1113, 7
        %s1116 = smul.addr %s1115, 4
        %s1117 = scalar_lea.vmem %s7, %s1116
      $region60: #{_forward_impl.1} parent=55 // pred_fallthru
        _
    $region56: #{_forward_impl.1} parent=5 // pred_fallthru
      _
  $region6: #{_forward_impl.1} parent=0 // loop_footer
    %s17 = sadd.s32 1, %s13
  $region7: #{_forward_impl.1} parent=0 // loop_footer_branch
    %12 = sbr.rel target = $region3
  $region8: #{_forward_impl.1} parent=0 // loop_exit
    _

</llo_original>
